<compile_context>
chip_gen: v5e
topology: v5e:2x2
jax: 0.10.0
libtpu: 0.0.40
codegen_flags: <defaults>
</compile_context>

<pallas_src>
import functools

import jax
import jax.numpy as jnp
from jax.experimental import pallas as pl
from jax.experimental.pallas import tpu as pltpu

LANES = 128
TR_MAX = 8192        # rows per streaming block: 8192 x 128 x 4 B = 4 MiB (f32)
CHUNK_ROWS = 256     # compute sub-chunk: keeps live intermediates ~128 KiB
NUM_CORES = 2        # leading 'parallel' axis -> both TensorCores on v7x


def _tweedie_kernel(x_ref, y_ref, o1_ref, o2_ref, *, p, rows_per_core, tr,
                    chunk, mask_tail):
    """Per-core raw sums:
         o1 += sum(y * (x + eps)^(1-p))      (p=1.5: y * rsqrt(x + eps))
         o2 += sum(x^(2-p))                  (p=1.5: sqrt(x))
       The -1/(1-p), 1/(2-p) constants and the division by N are applied once
       in the wrapper, not per element.
    """
    j = pl.program_id(1)

    @pl.when(j == 0)
    def _():
        o1_ref[...] = jnp.zeros_like(o1_ref)
        o2_ref[...] = jnp.zeros_like(o2_ref)

    eps = jnp.float32(1e-8)
    n_chunks = tr // chunk                 # static
    tail_rows = tr - n_chunks * chunk      # static; nonzero only on small slabs

    def terms(xs, ys):
        xs = xs.astype(jnp.float32)
        ys = ys.astype(jnp.float32)
        if p == 1.5:
            # One EUP op each instead of the exp+log pair jnp.power lowers to.
            t1 = ys * jax.lax.rsqrt(xs + eps)
            t2 = jnp.sqrt(xs)
        else:
            # Generic p keeps both pow()s for exact PyTorch semantics.  NOTE:
            # sharing a single log(x+eps) would save one transcendental but
            # biases x^(2-p) by eps (non-negligible near x == 0), so it is
            # intentionally not done.
            t1 = ys * jnp.power(xs + eps, jnp.float32(1.0 - p))
            t2 = jnp.power(xs, jnp.float32(2.0 - p))
        return t1, t2

    def partials(row0, nrows, masked):
        xs = x_ref[pl.ds(row0, nrows), :]
        ys = y_ref[pl.ds(row0, nrows), :]
        t1, t2 = terms(xs, ys)
        if masked:
            # Rows past the end of this core's slab are undefined (the last
            # grid block over-covers the array); mask with a select so any
            # NaN/Inf computed on garbage rows is discarded, not propagated.
            rr = jax.lax.broadcasted_iota(jnp.int32, (nrows, LANES), 0)
            valid = (j * tr + row0 + rr) < rows_per_core
            t1 = jnp.where(valid, t1, 0.0)
            t2 = jnp.where(valid, t2, 0.0)
        return (jnp.sum(t1, axis=0, keepdims=True),
                jnp.sum(t2, axis=0, keepdims=True))

    def accumulate(masked):
        def body(i, carry):
            a1, a2 = carry
            row0 = pl.multiple_of(i * chunk, chunk)
            p1, p2 = partials(row0, chunk, masked)
            return a1 + p1, a2 + p2

        zero = jnp.zeros((1, LANES), jnp.float32)
        a1, a2 = jax.lax.fori_loop(0, n_chunks, body, (zero, zero))
        if tail_rows:  # static ragged tail (only on small, single-block slabs)
            p1, p2 = partials(n_chunks * chunk, tail_rows, masked)
            a1 = a1 + p1
            a2 = a2 + p2
        o1_ref[...] += a1
        o2_ref[...] += a2

    if mask_tail:
        # Only the last row-block over-covers: pay the mask cost there only.
        is_tail = j == pl.num_programs(1) - 1
        pl.when(is_tail)(lambda: accumulate(True))
        pl.when(jnp.logical_not(is_tail))(lambda: accumulate(False))
    else:
        accumulate(False)


@functools.partial(jax.jit, static_argnames=("p", "tr_max"))
def tweedie_loss(x: jax.Array, y: jax.Array, p: float = 1.5,
                 tr_max: int = TR_MAX) -> jax.Array:
    assert x.shape == y.shape, "x and y must have identical shapes"
    n_total = int(x.size)
    assert n_total > 0

    xf = x.reshape(-1)
    yf = y.reshape(-1)

    rows = -(-n_total // LANES)            # ceil(n / 128)
    pad = rows * LANES - n_total
    if pad:
        # Only the final partial lane-row (< 128 elements) is padded; the old
        # round-up to NUM_CORES*tr*128 (full-array copy) is handled by
        # in-kernel masking instead.  Zero padding contributes exactly 0 loss
        # for Tweedie powers 1 < p < 2.
        # TODO(synk): a fully copy-free path for n % 128 != 0 would need a 1-D
        # ANY-space manual-DMA kernel.
        xf = jnp.pad(xf, (0, pad))
        yf = jnp.pad(yf, (0, pad))

    # 2-way split for v7x's two TensorCores, but only when it is free (rows
    # even).  On 1-TC chips (v5e/v6e) the size-2 'parallel' axis is just a
    # 2-iteration outer loop and costs nothing.
    num_cores = NUM_CORES if (rows % NUM_CORES == 0 and rows >= 2 * NUM_CORES) else 1
    rows_per_core = rows // num_cores

    # Row tile: the whole slab when it fits (always a legal block shape, no
    # masking needed); otherwise big tr_max-row streaming blocks with an
    # in-kernel masked tail block.
    tr = rows_per_core if rows_per_core <= tr_max else tr_max
    num_j = -(-rows_per_core // tr)
    mask_tail = (rows_per_core % tr) != 0
    chunk = CHUNK_ROWS if tr > CHUNK_ROWS else tr

    x_blocks = xf.reshape(num_cores, rows_per_core, LANES)
    y_blocks = yf.reshape(num_cores, rows_per_core, LANES)

    in_idx = lambda c, j: (c, j, 0)
    if num_j >= 3:
        # Deeper input buffering hides per-step DMA issue latency on short steps.
        try:
            in_spec = pl.BlockSpec((None, tr, LANES), in_idx,
                                   pipeline_mode=pl.Buffered(3))
        except Exception:  # jax build without pipeline_mode / pl.Buffered
            in_spec = pl.BlockSpec((None, tr, LANES), in_idx)
    else:
        in_spec = pl.BlockSpec((None, tr, LANES), in_idx)

    out_spec = pl.BlockSpec((None, 1, LANES), lambda c, j: (c, 0, 0))
    out_struct = jax.ShapeDtypeStruct((num_cores, 1, LANES), jnp.float32)

    kernel = functools.partial(
        _tweedie_kernel, p=float(p), rows_per_core=rows_per_core, tr=tr,
        chunk=chunk, mask_tail=mask_tail)

    s1, s2 = pl.pallas_call(
        kernel,
        out_shape=(out_struct, out_struct),
        grid_spec=pltpu.PrefetchScalarGridSpec(
            num_scalar_prefetch=0,
            grid=(num_cores, num_j),
            in_specs=[in_spec, in_spec],
            # Same block index across the (reduction) j axis -> resident
            # per-core accumulators in VMEM.
            out_specs=[out_spec, out_spec],
        ),
        compiler_params=pltpu.CompilerParams(
            dimension_semantics=("parallel", "arbitrary"),
            vmem_limit_bytes=32 * 1024 * 1024,
        ),
    )(x_blocks, y_blocks)

    # Constants, sign and mean applied once here instead of per element.
    total = (-jnp.sum(s1) / jnp.float32(1.0 - p)
             + jnp.sum(s2) / jnp.float32(2.0 - p))
    return total / jnp.float32(n_total)


def tweedie_loss_ref(x, y, p=1.5):
    x = x.astype(jnp.float32)
    y = y.astype(jnp.float32)
    loss = (-y * jnp.power(x + 1e-8, 1.0 - p) / (1.0 - p)
            + jnp.power(x, 2.0 - p) / (2.0 - p))
    return jnp.mean(loss)


if __name__ == "__main__":
    key = jax.random.PRNGKey(0)
    kx, ky, kx2, ky2, kx3, ky3 = jax.random.split(key, 6)

    # 1) Forecast-style (batch, channels, H, W); Tweedie inputs are non-negative.
    shape = (2, 4, 16, 16)
    x = jax.random.uniform(kx, shape, dtype=jnp.float32, minval=0.05, maxval=2.0)
    y = jax.random.uniform(ky, shape, dtype=jnp.float32, minval=0.0, maxval=3.0)
    out = jax.block_until_ready(tweedie_loss(x, y, p=1.5))
    ref = tweedie_loss_ref(x, y, p=1.5)
    assert jnp.allclose(out, ref, rtol=1e-5, atol=1e-5), (out, ref)

    # 2) Element count not a multiple of 128 (minimal pad + ragged-row slab).
    shape2 = (3, 5, 7, 11)
    x2 = jax.random.uniform(kx2, shape2, dtype=jnp.float32, minval=0.05, maxval=2.0)
    y2 = jax.random.uniform(ky2, shape2, dtype=jnp.float32, minval=0.0, maxval=3.0)
    out2 = jax.block_until_ready(tweedie_loss(x2, y2, p=1.5))
    ref2 = tweedie_loss_ref(x2, y2, p=1.5)
    assert jnp.allclose(out2, ref2, rtol=1e-5, atol=1e-5), (out2, ref2)

    # 3) Small tr_max override exercises the real streaming path on a small
    #    shape: multi-block grid, in-kernel masked (over-covering) tail block,
    #    and the deeper Buffered(3) input pipeline.
    shape3 = (8, 9, 16, 16)   # 18432 elems -> 144 rows -> 2 cores x 72 rows
    x3 = jax.random.uniform(kx3, shape3, dtype=jnp.float32, minval=0.05, maxval=2.0)
    y3 = jax.random.uniform(ky3, shape3, dtype=jnp.float32, minval=0.0, maxval=3.0)
    out3 = jax.block_until_ready(tweedie_loss(x3, y3, p=1.5, tr_max=16))
    ref3 = tweedie_loss_ref(x3, y3, p=1.5)
    assert jnp.allclose(out3, ref3, rtol=1e-5, atol=1e-5), (out3, ref3)

    print("KERNEL_OK")
</pallas_src>

<mosaic_0001>
module attributes {stable_mosaic.version = 11 : i64} {
  func.func @_tweedie_kernel(%arg0: i32, %arg1: i32, %arg2: memref<1x8x128xf32, #tpu.memory_space<vmem>>, %arg3: memref<1x8x128xf32, #tpu.memory_space<vmem>>, %arg4: memref<1x1x128xf32, #tpu.memory_space<vmem>>, %arg5: memref<1x1x128xf32, #tpu.memory_space<vmem>>) attributes {dimension_semantics = [#tpu.dimension_semantics<parallel>, #tpu.dimension_semantics<arbitrary>], iteration_bounds = array<i64: 2, 1>, scalar_prefetch = 0 : i64, scratch_operands = 0 : i64, tpu.core_type = #tpu.core_type<tc>, window_params = [{transform_indices = @transform_0, window_bounds = array<i64: 1, 8, 128>}, {transform_indices = @transform_1, window_bounds = array<i64: 1, 8, 128>}, {transform_indices = @transform_2, window_bounds = array<i64: 1, 1, 128>}, {transform_indices = @transform_3, window_bounds = array<i64: 1, 1, 128>}]} {
    %c0_i32 = arith.constant 0 : i32
    %0 = arith.cmpi eq, %arg1, %c0_i32 : i32
    %1 = arith.extui %0 : i1 to i32
    %c0_i32_0 = arith.constant 0 : i32
    %2 = arith.cmpi ne, %1, %c0_i32_0 : i32
    scf.if %2 {
      %cst_20 = arith.constant 0.000000e+00 : f32
      %35 = vector.broadcast %cst_20 : f32 to vector<1x128xf32>
      %c0_21 = arith.constant 0 : index
      %c0_22 = arith.constant 0 : index
      %c0_23 = arith.constant 0 : index
      %36 = vector.load %arg4[%c0_21, %c0_22, %c0_23] : memref<1x1x128xf32, #tpu.memory_space<vmem>>, vector<1x1x128xf32>
      %37 = vector.shape_cast %36 : vector<1x1x128xf32> to vector<1x128xf32>
      %38 = vector.shape_cast %35 : vector<1x128xf32> to vector<1x1x128xf32>
      tpu.vector_store %arg4[%c0_21, %c0_22, %c0_23], %38 {strides = array<i32>} : memref<1x1x128xf32, #tpu.memory_space<vmem>>, vector<1x1x128xf32>,
      %cst_24 = arith.constant 0.000000e+00 : f32
      %39 = vector.broadcast %cst_24 : f32 to vector<1x128xf32>
      %c0_25 = arith.constant 0 : index
      %c0_26 = arith.constant 0 : index
      %c0_27 = arith.constant 0 : index
      %40 = vector.load %arg5[%c0_25, %c0_26, %c0_27] : memref<1x1x128xf32, #tpu.memory_space<vmem>>, vector<1x1x128xf32>
      %41 = vector.shape_cast %40 : vector<1x1x128xf32> to vector<1x128xf32>
      %42 = vector.shape_cast %39 : vector<1x128xf32> to vector<1x1x128xf32>
      tpu.vector_store %arg5[%c0_25, %c0_26, %c0_27], %42 {strides = array<i32>} : memref<1x1x128xf32, #tpu.memory_space<vmem>>, vector<1x1x128xf32>,
    } else {
    }
    %cst = arith.constant 0.000000e+00 : f32
    %3 = vector.broadcast %cst : f32 to vector<1x128xf32>
    %cst_1 = arith.constant 9.99999993E-9 : f32
    %c0_i32_2 = arith.constant 0 : i32
    %c8_i32 = arith.constant 8 : i32
    %4 = arith.muli %c0_i32_2, %c8_i32 : i32
    %5 = tpu.assume_multiple %4, 8 : i32
    %c0 = arith.constant 0 : index
    %6 = arith.index_cast %5 : i32 to index
    %c0_3 = arith.constant 0 : index
    %7 = vector.load %arg2[%c0, %6, %c0_3] : memref<1x8x128xf32, #tpu.memory_space<vmem>>, vector<1x8x128xf32>
    %8 = vector.shape_cast %7 : vector<1x8x128xf32> to vector<8x128xf32>
    %c0_4 = arith.constant 0 : index
    %9 = arith.index_cast %5 : i32 to index
    %c0_5 = arith.constant 0 : index
    %10 = vector.load %arg3[%c0_4, %9, %c0_5] : memref<1x8x128xf32, #tpu.memory_space<vmem>>, vector<1x8x128xf32>
    %11 = vector.shape_cast %10 : vector<1x8x128xf32> to vector<8x128xf32>
    %12 = vector.broadcast %cst_1 : f32 to vector<8x128xf32>
    %13 = arith.addf %8, %12 : vector<8x128xf32>
    %14 = math.rsqrt %13 : vector<8x128xf32>
    %15 = arith.mulf %11, %14 : vector<8x128xf32>
    %16 = math.sqrt %8 : vector<8x128xf32>
    %cst_6 = arith.constant dense<0.000000e+00> : vector<128xf32>
    %17 = vector.multi_reduction <add>, %15, %cst_6 [0] : vector<8x128xf32> to vector<128xf32>
    %18 = vector.shape_cast %17 : vector<128xf32> to vector<1x128xf32>
    %cst_7 = arith.constant dense<0.000000e+00> : vector<128xf32>
    %19 = vector.multi_reduction <add>, %16, %cst_7 [0] : vector<8x128xf32> to vector<128xf32>
    %20 = vector.shape_cast %19 : vector<128xf32> to vector<1x128xf32>
    %21 = arith.addf %3, %18 : vector<1x128xf32>
    %22 = arith.addf %3, %20 : vector<1x128xf32>
    %c1_i32 = arith.constant 1 : i32
    %c0_8 = arith.constant 0 : index
    %c0_9 = arith.constant 0 : index
    %c0_10 = arith.constant 0 : index
    %23 = vector.load %arg4[%c0_8, %c0_9, %c0_10] : memref<1x1x128xf32, #tpu.memory_space<vmem>>, vector<1x1x128xf32>
    %24 = vector.shape_cast %23 : vector<1x1x128xf32> to vector<1x128xf32>
    %25 = arith.addf %24, %21 : vector<1x128xf32>
    %c0_11 = arith.constant 0 : index
    %c0_12 = arith.constant 0 : index
    %c0_13 = arith.constant 0 : index
    %26 = vector.load %arg4[%c0_11, %c0_12, %c0_13] : memref<1x1x128xf32, #tpu.memory_space<vmem>>, vector<1x1x128xf32>
    %27 = vector.shape_cast %26 : vector<1x1x128xf32> to vector<1x128xf32>
    %28 = vector.shape_cast %25 : vector<1x128xf32> to vector<1x1x128xf32>
    tpu.vector_store %arg4[%c0_11, %c0_12, %c0_13], %28 {strides = array<i32>} : memref<1x1x128xf32, #tpu.memory_space<vmem>>, vector<1x1x128xf32>,
    %c0_14 = arith.constant 0 : index
    %c0_15 = arith.constant 0 : index
    %c0_16 = arith.constant 0 : index
    %29 = vector.load %arg5[%c0_14, %c0_15, %c0_16] : memref<1x1x128xf32, #tpu.memory_space<vmem>>, vector<1x1x128xf32>
    %30 = vector.shape_cast %29 : vector<1x1x128xf32> to vector<1x128xf32>
    %31 = arith.addf %30, %22 : vector<1x128xf32>
    %c0_17 = arith.constant 0 : index
    %c0_18 = arith.constant 0 : index
    %c0_19 = arith.constant 0 : index
    %32 = vector.load %arg5[%c0_17, %c0_18, %c0_19] : memref<1x1x128xf32, #tpu.memory_space<vmem>>, vector<1x1x128xf32>
    %33 = vector.shape_cast %32 : vector<1x1x128xf32> to vector<1x128xf32>
    %34 = vector.shape_cast %31 : vector<1x128xf32> to vector<1x1x128xf32>
    tpu.vector_store %arg5[%c0_17, %c0_18, %c0_19], %34 {strides = array<i32>} : memref<1x1x128xf32, #tpu.memory_space<vmem>>, vector<1x1x128xf32>,
    return
  }
  func.func @transform_0(%arg0: i32, %arg1: i32) -> (i32, i32, i32) {
    %c0_i32 = arith.constant 0 : i32
    %c0_i32_0 = arith.constant 0 : i32
    return %arg0, %arg1, %c0_i32 : i32, i32, i32
  }
  func.func @transform_1(%arg0: i32, %arg1: i32) -> (i32, i32, i32) {
    %c0_i32 = arith.constant 0 : i32
    %c0_i32_0 = arith.constant 0 : i32
    return %arg0, %arg1, %c0_i32 : i32, i32, i32
  }
  func.func @transform_2(%arg0: i32, %arg1: i32) -> (i32, i32, i32) {
    %c0_i32 = arith.constant 0 : i32
    %c0_i32_0 = arith.constant 0 : i32
    %c0_i32_1 = arith.constant 0 : i32
    return %arg0, %c0_i32, %c0_i32_0 : i32, i32, i32
  }
  func.func @transform_3(%arg0: i32, %arg1: i32) -> (i32, i32, i32) {
    %c0_i32 = arith.constant 0 : i32
    %c0_i32_0 = arith.constant 0 : i32
    %c0_i32_1 = arith.constant 0 : i32
    return %arg0, %c0_i32, %c0_i32_0 : i32, i32, i32
  }
}

</mosaic_0001>

<llo_original>
// kernel: tweedie_loss.1
$region0: #{tweedie_loss.1}
  #allocation0 [shape = 'u32[]', space=smem, size = 0x4, offset = 0x4, fixed_abs, tag = 'smem constant byte address 0x4 - core index']
  #allocation1 [shape = 'u32[72,128]{1,0:T(1,128)}', space=vmem, size = 0x9000, scoped, tag = 'internal scratch']
  %s0 = inlined_call_operand.vmem [shape: f32[2,8,128], index: 0, kind: input, shape index: {}]
  %s1 = inlined_call_operand.vmem [shape: f32[2,8,128], index: 1, kind: input, shape index: {}]
  %s2 = inlined_call_operand.vmem [shape: f32[2,1,128], index: 2, kind: output, shape index: {0}]
  %s3 = inlined_call_operand.vmem [shape: f32[2,1,128], index: 3, kind: output, shape index: {1}]
  %4 = xla_tuple %s2, %s3
  %s5 = sld [smem:[#allocation0]]
  $region53: #{tweedie_loss.1} parent=0
    _
  %s7 = ssub.s32 1, %s5
  %s8 = scalar_select 0, %s7, %s5
  loop: start=0, step=1, limit=4
  $region2: #{tweedie_loss.1} parent=0 // loop_pre_header
    _
  $region3: #{tweedie_loss.1} parent=0 // loop_header
    %s10 = sphi 0, %s14
    %p11 = scmp.ge.s32.totalorder %s10, 4
    %s17 = sphi 0, %s29
    %s18 = sphi 0, %s25
    %s19 = sphi 0, %s17
    %s20 = sphi 0, %s18
    %s21 = sphi 0, %s19
    %s22 = sphi 0, %s20
    %s34 = sphi 0, %s36
    %s37 = sphi 0, %s34
    %s38 = sphi 0, %s37
    %s54 = sphi 0, %s38
    %s62 = sphi 0, %s64
    %s65 = sphi 0, %s62
    %s66 = sphi 0, %s65
    %s82 = sphi 0, %s66
    %s88 = sphi 0, %s90
    %s91 = sphi 0, %s88
    %s92 = sphi 0, %s91
    %s108 = sphi 0, %s92
    %s114 = sphi 0, %s116
    %s117 = sphi 0, %s114
    %s118 = sphi 0, %s117
    %s134 = sphi 0, %s118
  $region4: #{tweedie_loss.1} parent=0 // loop_header_branch
    %13 = sbr.rel (%p11) target = $region8
  $region5: #{tweedie_loss.1} parent=0 // loop_body
    %s15 = ssub.s32 %s10, 1
    %s16 = ssub.s32 %s10, 2
    %s23 = sadd.s32 1, %s18
    %p24 = scmp.ge.s32.totalorder %s23, 1
    %s25 = scalar_select %p24, 0, %s23
    %s26 = sadd.s32 1, %s17
    %s27 = scalar_select %p24, %s26, %s17
    %p28 = scmp.ge.s32.totalorder %s27, 2
    %s29 = scalar_select %p28, 0, %s27
    %s30 = ssub.s32 %s17, %s29
    %s31 = ssub.s32 %s18, %s25
    %s32 = sor.u32 %s30, %s31
    %p33 = scmp.eq.s32.totalorder %s32, 0
    %s35 = sadd.s32 %s34, 1
    %s36 = scalar_select %p33, %s34, %s35
    %p39 = pneg %p33
    %p40 = scmp.eq.s32.totalorder %s10, 1
    %p41 = por %p39, %p40
    %p42 = scmp.ne.s32.totalorder %s34, %s37
    %p43 = scmp.eq.s32.totalorder %s10, 0
    %p44 = por %p42, %p43
    %p45 = scmp.ne.s32.totalorder %s34, %s37
    %p46 = scmp.eq.s32.totalorder %s15, 1
    %p47 = por %p45, %p46
    %p48 = scmp.ne.s32.totalorder %s37, %s38
    %p49 = scmp.eq.s32.totalorder %s15, 0
    %p50 = por %p48, %p49
    %p51 = scmp.ne.s32.totalorder %s37, %s38
    %p52 = scmp.eq.s32.totalorder %s16, 1
    %p53 = por %p51, %p52
    %p55 = scmp.ne.s32.totalorder %s38, %s54
    %p56 = scmp.eq.s32.totalorder %s16, 0
    %p57 = por %p55, %p56
    %s58 = ssub.s32 %s17, %s29
    %s59 = ssub.s32 %s18, %s25
    %s60 = sor.u32 %s58, %s59
    %p61 = scmp.eq.s32.totalorder %s60, 0
    %s63 = sadd.s32 %s62, 1
    %s64 = scalar_select %p61, %s62, %s63
    %p67 = pneg %p61
    %p68 = scmp.eq.s32.totalorder %s10, 1
    %p69 = por %p67, %p68
    %p70 = scmp.ne.s32.totalorder %s62, %s65
    %p71 = scmp.eq.s32.totalorder %s10, 0
    %p72 = por %p70, %p71
    %p73 = scmp.ne.s32.totalorder %s62, %s65
    %p74 = scmp.eq.s32.totalorder %s15, 1
    %p75 = por %p73, %p74
    %p76 = scmp.ne.s32.totalorder %s65, %s66
    %p77 = scmp.eq.s32.totalorder %s15, 0
    %p78 = por %p76, %p77
    %p79 = scmp.ne.s32.totalorder %s65, %s66
    %p80 = scmp.eq.s32.totalorder %s16, 1
    %p81 = por %p79, %p80
    %p83 = scmp.ne.s32.totalorder %s66, %s82
    %p84 = scmp.eq.s32.totalorder %s16, 0
    %p85 = por %p83, %p84
    %s86 = ssub.s32 %s17, %s29
    %p87 = scmp.eq.s32.totalorder %s86, 0
    %s89 = sadd.s32 %s88, 1
    %s90 = scalar_select %p87, %s88, %s89
    %p93 = pneg %p87
    %p94 = scmp.eq.s32.totalorder %s10, 1
    %p95 = por %p93, %p94
    %p96 = scmp.ne.s32.totalorder %s88, %s91
    %p97 = scmp.eq.s32.totalorder %s10, 0
    %p98 = por %p96, %p97
    %p99 = scmp.ne.s32.totalorder %s88, %s91
    %p100 = scmp.eq.s32.totalorder %s15, 1
    %p101 = por %p99, %p100
    %p102 = scmp.ne.s32.totalorder %s91, %s92
    %p103 = scmp.eq.s32.totalorder %s15, 0
    %p104 = por %p102, %p103
    %p105 = scmp.ne.s32.totalorder %s91, %s92
    %p106 = scmp.eq.s32.totalorder %s16, 1
    %p107 = por %p105, %p106
    %p109 = scmp.ne.s32.totalorder %s92, %s108
    %p110 = scmp.eq.s32.totalorder %s16, 0
    %p111 = por %p109, %p110
    %s112 = ssub.s32 %s17, %s29
    %p113 = scmp.eq.s32.totalorder %s112, 0
    %s115 = sadd.s32 %s114, 1
    %s116 = scalar_select %p113, %s114, %s115
    %p119 = pneg %p113
    %p120 = scmp.eq.s32.totalorder %s10, 1
    %p121 = por %p119, %p120
    %p122 = scmp.ne.s32.totalorder %s114, %s117
    %p123 = scmp.eq.s32.totalorder %s10, 0
    %p124 = por %p122, %p123
    %p125 = scmp.ne.s32.totalorder %s114, %s117
    %p126 = scmp.eq.s32.totalorder %s15, 1
    %p127 = por %p125, %p126
    %p128 = scmp.ne.s32.totalorder %s117, %s118
    %p129 = scmp.eq.s32.totalorder %s15, 0
    %p130 = por %p128, %p129
    %p131 = scmp.ne.s32.totalorder %s117, %s118
    %p132 = scmp.eq.s32.totalorder %s16, 1
    %p133 = por %p131, %p132
    %p135 = scmp.ne.s32.totalorder %s118, %s134
    %p136 = scmp.eq.s32.totalorder %s16, 0
    %p137 = por %p135, %p136
    %p138 = scmp.le.s32.totalorder 1, %s10
    %p139 = scmp.lt.s32.totalorder %s10, 3
    %p140 = pnand %p138, %p139
    %p141 = pneg %p140
    // Predicated region
    $region9: #{tweedie_loss.1} parent=5 // pred_check
      _
    $region10: #{tweedie_loss.1} parent=5 // pred_check_branch
      %143 = sbr.rel (%p140) target = $region12
    $region11: #{tweedie_loss.1} parent=5 // pred_region
      %s144 = ssub.s32 %s10, 1
    $region12: #{tweedie_loss.1} parent=5 // pred_fallthru
      _
    %p145 = scmp.lt.s32.totalorder %s10, 2
    // Predicated region
    $region13: #{tweedie_loss.1} parent=5 // pred_check
      %p146 = pneg %p145
    $region14: #{tweedie_loss.1} parent=5 // pred_check_branch
      %148 = sbr.rel (%p146) target = $region16
    $region15: #{tweedie_loss.1} parent=5 // pred_region
      // Predicated region
      $region17: #{tweedie_loss.1} parent=15 // pred_check
        %p149 = pneg %p44
      $region18: #{tweedie_loss.1} parent=15 // pred_check_branch
        %151 = sbr.rel (%p149) target = $region20
      $region19: #{tweedie_loss.1} parent=15 // pred_region
        %p152 = scmp.lt.s32.totalorder %s17, 1
        %s153 = scalar_select %p152, %s17, 1
        %p154 = scmp.lt.s32.totalorder %s18, 0
        %s155 = scalar_select %p154, %s18, 0
        %s156 = sadd.s32 %s155, %s153
        %s157 = smul.addr %s156, 8
        %s158 = scalar_lea.vmem %s0, %s157
      $region20: #{tweedie_loss.1} parent=15 // pred_fallthru
        _
      // Predicated region
      $region21: #{tweedie_loss.1} parent=15 // pred_check
        %p159 = pneg %p72
      $region22: #{tweedie_loss.1} parent=15 // pred_check_branch
        %161 = sbr.rel (%p159) target = $region24
      $region23: #{tweedie_loss.1} parent=15 // pred_region
        %p162 = scmp.lt.s32.totalorder %s17, 1
        %s163 = scalar_select %p162, %s17, 1
        %p164 = scmp.lt.s32.totalorder %s18, 0
        %s165 = scalar_select %p164, %s18, 0
        %s166 = sadd.s32 %s165, %s163
        %s167 = smul.addr %s166, 8
        %s168 = scalar_lea.vmem %s1, %s167
      $region24: #{tweedie_loss.1} parent=15 // pred_fallthru
        _
    $region16: #{tweedie_loss.1} parent=5 // pred_fallthru
      _
    %p169 = scmp.le.s32.totalorder 1, %s10
    %p170 = scmp.lt.s32.totalorder %s10, 3
    %p171 = pnand %p169, %p170
    %p172 = pneg %p171
    // Predicated region
    $region25: #{tweedie_loss.1} parent=5 // pred_check
      _
    $region26: #{tweedie_loss.1} parent=5 // pred_check_branch
      %174 = sbr.rel (%p171) target = $region28
    $region27: #{tweedie_loss.1} parent=5 // pred_region
      %s175 = ssub.s32 %s10, 1
      %p176 = scmp.lt.s32.totalorder %s19, 1
      %s177 = scalar_select %p176, %s19, 1
      %p178 = scmp.lt.s32.totalorder %s20, 0
      %s179 = scalar_select %p178, %s20, 0
      %s180 = sadd.s32 %s179, %s177
      %s181 = smul.addr %s180, 8
      %s182 = scalar_lea.vmem %s0, %s181
      %p183 = pneg %p50
      %p184 = pneg %p47
      %p185 = scmp.lt.s32.totalorder %s19, 1
      %s186 = scalar_select %p185, %s19, 1
      %p187 = scmp.lt.s32.totalorder %s20, 0
      %s188 = scalar_select %p187, %s20, 0
      %s189 = sadd.s32 %s188, %s186
      %s190 = smul.addr %s189, 8
      %s191 = scalar_lea.vmem %s1, %s190
      %p192 = pneg %p78
      %p193 = pneg %p75
      %p194 = pneg %p104
      %p195 = pneg %p101
      %p196 = scmp.lt.s32.totalorder %s19, 1
      %s197 = scalar_select %p196, %s19, 1
      %s198 = scalar_lea.vmem %s2, %s197
      %p199 = pneg %p130
      %p200 = pneg %p127
      %p201 = scmp.lt.s32.totalorder %s19, 1
      %s202 = scalar_select %p201, %s19, 1
      %s203 = scalar_lea.vmem %s3, %s202
      %p204 = scmp.lt.s32.totalorder %s19, 1
      %s205 = scalar_select %p204, %s19, 1
      %p206 = scmp.lt.s32.totalorder %s20, 0
      %s207 = scalar_select %p206, %s20, 0
      %s208 = sadd.s32 %s207, %s205
      %s209 = smul.addr %s208, 8
      %s210 = scalar_lea.vmem %s0, %s209
      %p211 = scmp.lt.s32.totalorder %s19, 1
      %s212 = scalar_select %p211, %s19, 1
      %p213 = scmp.lt.s32.totalorder %s20, 0
      %s214 = scalar_select %p213, %s20, 0
      %s215 = sadd.s32 %s214, %s212
      %s216 = smul.addr %s215, 8
      %s217 = scalar_lea.vmem %s1, %s216
      %p218 = scmp.lt.s32.totalorder %s19, 1
      %s219 = scalar_select %p218, %s19, 1
      %s220 = scalar_lea.vmem %s2, %s219
      %p221 = scmp.lt.s32.totalorder %s19, 1
      %s222 = scalar_select %p221, %s19, 1
      %s223 = scalar_lea.vmem %s3, %s222
      %p224 = scmp.eq.s32.totalorder %s20, 0
      // Predicated region
      $region29: #{tweedie_loss.1} parent=27 // pred_check
        %p225 = pneg %p224
      $region30: #{tweedie_loss.1} parent=27 // pred_check_branch
        %227 = sbr.rel (%p225) target = $region32
      $region31: #{tweedie_loss.1} parent=27 // pred_region
        %228 = vst [vmem:[%s220] sm:$0x1] 0.0
        %229 = vst [vmem:[%s223] sm:$0x1] 0.0
      $region32: #{tweedie_loss.1} parent=27 // pred_fallthru
        _
      %v230 = vld [vmem:[%s210] sm:$0xff]
      %v231 = vld [vmem:[%s217] sm:$0xff]
      %v232 = vadd.f32 %v230, 1e-08
      %v233 = vrsqrt.pop %v232
      %v234 = vmul.f32 %v233, %v232
      %v235 = vmul.f32 %v234, %v233
      %v236 = vmul.f32 0.5, %v235
      %v237 = vsub.f32 1.5, %v236
      %v238 = vmul.f32 %v233, %v237
      %vm239 = vweird.f32 %v232
      %vm240 = vweird.f32 %v233
      %vm241 = vmor %vm239, %vm240
      %v242 = vsel %vm241, %v233, %v238
      %v243 = vmul.f32 %v231, %v242
      %v244 = vrsqrt.pop %v230
      %v245 = vmul.f32 %v244, %v230
      %v246 = vmul.f32 %v245, %v244
      %v247 = vmul.f32 0.5, %v246
      %v248 = vsub.f32 1.5, %v247
      %v249 = vmul.f32 %v244, %v248
      %v250 = vmul.f32 %v230, %v249
      %vm251 = vcmp.eq.f32.partialorder %v230, inf
      %v252 = vsel %vm251, %v230, %v250
      %vm253 = vcmp.eq.f32.partialorder %v230, 0.0
      %v254 = vand.u32 %v230, 2147483648
      %v255 = vsel %vm253, %v254, %v252
      %v256 = vrot.slane %v243, 4
      %v257 = vadd.f32 %v243, %v256
      %v258 = vrot.slane %v257, 2
      %v259 = vadd.f32 %v257, %v258
      %v260 = vrot.slane %v259, 1
      %v261 = vadd.f32 %v259, %v260
      %v262 = vrot.slane %v255, 4
      %v263 = vadd.f32 %v255, %v262
      %v264 = vrot.slane %v263, 2
      %v265 = vadd.f32 %v263, %v264
      %v266 = vrot.slane %v265, 1
      %v267 = vadd.f32 %v265, %v266
      %v268 = vadd.f32 %v261, 0.0
      %v269 = vadd.f32 %v267, 0.0
      %v270 = vld [vmem:[%s220] sm:$0x1]
      %v271 = vadd.f32 %v270, %v268
      %272 = vst [vmem:[%s220] sm:$0x1] %v271
      %v273 = vld [vmem:[%s223] sm:$0x1]
      %v274 = vadd.f32 %v273, %v269
      %275 = vst [vmem:[%s223] sm:$0x1] %v274
      %p276 = scmp.lt.s32.totalorder %s19, 1
      %s277 = scalar_select %p276, %s19, 1
      %s278 = scalar_lea.vmem %s2, %s277
      %p279 = scmp.lt.s32.totalorder %s19, 1
      %s280 = scalar_select %p279, %s19, 1
      %s281 = scalar_lea.vmem %s3, %s280
      // Predicated region
      $region33: #{tweedie_loss.1} parent=27 // pred_check
        %p282 = pneg %p101
      $region34: #{tweedie_loss.1} parent=27 // pred_check_branch
        %284 = sbr.rel (%p282) target = $region36
      $region35: #{tweedie_loss.1} parent=27 // pred_region
        _
      $region36: #{tweedie_loss.1} parent=27 // pred_fallthru
        _
      // Predicated region
      $region37: #{tweedie_loss.1} parent=27 // pred_check
        %p285 = pneg %p127
      $region38: #{tweedie_loss.1} parent=27 // pred_check_branch
        %287 = sbr.rel (%p285) target = $region40
      $region39: #{tweedie_loss.1} parent=27 // pred_region
        _
      $region40: #{tweedie_loss.1} parent=27 // pred_fallthru
        _
    $region28: #{tweedie_loss.1} parent=5 // pred_fallthru
      _
    %p288 = scmp.le.s32.totalorder 2, %s10
    // Predicated region
    $region41: #{tweedie_loss.1} parent=5 // pred_check
      %p289 = pneg %p288
    $region42: #{tweedie_loss.1} parent=5 // pred_check_branch
      %291 = sbr.rel (%p289) target = $region44
    $region43: #{tweedie_loss.1} parent=5 // pred_region
      %s292 = ssub.s32 %s10, 2
      // Predicated region
      $region45: #{tweedie_loss.1} parent=43 // pred_check
        %p293 = pneg %p107
      $region46: #{tweedie_loss.1} parent=43 // pred_check_branch
        %295 = sbr.rel (%p293) target = $region48
      $region47: #{tweedie_loss.1} parent=43 // pred_region
        %p296 = scmp.lt.s32.totalorder %s21, 1
        %s297 = scalar_select %p296, %s21, 1
        %s298 = scalar_lea.vmem %s2, %s297
      $region48: #{tweedie_loss.1} parent=43 // pred_fallthru
        _
      // Predicated region
      $region49: #{tweedie_loss.1} parent=43 // pred_check
        %p299 = pneg %p133
      $region50: #{tweedie_loss.1} parent=43 // pred_check_branch
        %301 = sbr.rel (%p299) target = $region52
      $region51: #{tweedie_loss.1} parent=43 // pred_region
        %p302 = scmp.lt.s32.totalorder %s21, 1
        %s303 = scalar_select %p302, %s21, 1
        %s304 = scalar_lea.vmem %s3, %s303
      $region52: #{tweedie_loss.1} parent=43 // pred_fallthru
        _
    $region44: #{tweedie_loss.1} parent=5 // pred_fallthru
      _
  $region6: #{tweedie_loss.1} parent=0 // loop_footer
    %s14 = sadd.s32 1, %s10
  $region7: #{tweedie_loss.1} parent=0 // loop_footer_branch
    %9 = sbr.rel target = $region3
  $region8: #{tweedie_loss.1} parent=0 // loop_exit
    _

</llo_original>
